<compile_context>
chip_gen: v7x
topology: tpu7x:2x2x1
jax: 0.10.0
libtpu: 0.0.40
codegen_flags: <defaults>
</compile_context>

<pallas_src>
import math

import jax
import jax.numpy as jnp
from jax.experimental import pallas as pl
from jax.experimental.pallas import tpu as pltpu


_MIN_PALLAS_ELEMS = 256 * 1024          # below this, let XLA fuse the add
_TILE_BUDGET_BYTES = 4 * 1024 * 1024    # per-tile budget, measured in VMEM-padded bytes
_VMEM_LIMIT_BYTES = 32 * 1024 * 1024    # explicit scoped-VMEM limit (<= physical on all gens)


def _round_up(n: int, m: int) -> int:
    return ((n + m - 1) // m) * m


def _sublane_multiple(itemsize: int) -> int:
    # f32 -> 8, bf16 -> 16, int8/fp8 -> 32 (packed rows travel in pairs/quads).
    return max(8, 8 * (4 // max(1, itemsize)))


def _build_pe(context_size: int, d_model: int, dtype=jnp.float32) -> jnp.ndarray:
    """Sinusoidal table identical to the PyTorch __init__; built once in model dtype."""
    position = jnp.arange(context_size, dtype=jnp.float32)[:, None]              # (C, 1)
    div_term = jnp.exp(
        jnp.arange(0, d_model, 2, dtype=jnp.float32) * (-math.log(10000.0) / d_model)
    )
    angles = position * div_term                                                  # (C, ceil(D/2))
    pe = jnp.zeros((context_size, d_model), dtype=jnp.float32)
    pe = pe.at[:, 0::2].set(jnp.sin(angles))
    pe = pe.at[:, 1::2].set(jnp.cos(angles)[:, : d_model // 2])                   # even D, like PyTorch
    return pe[None, :, :].astype(dtype)                                           # (1, C, D)


def _add_pe_kernel(x_ref, pe_ref, o_ref):
    # (1, tile_rows, lane) VMEM tiles. Pure VPU elementwise add.
    o_ref[...] = (x_ref[...] + pe_ref[...]).astype(o_ref.dtype)


def _pe_block_spec(shape, index_map):
    """pe BlockSpec with a single pipeline buffer (its block index changes at most
    once per inner sweep, so losing double-buffering costs nothing and reclaims a
    full tile of VMEM). Guarded in case pipeline_mode/Buffered is unavailable."""
    try:
        return pl.BlockSpec(shape, index_map, pipeline_mode=pl.Buffered(1))
    except Exception:  # pragma: no cover - older jax without pipeline_mode
        return pl.BlockSpec(shape, index_map)


def _pick_tile_rows(rows: int, lane: int, itemsize: int,
                    budget_bytes: int = _TILE_BUDGET_BYTES) -> int:
    """Largest legal row-tile whose VMEM-padded footprint fits the budget."""
    sub = _sublane_multiple(itemsize)
    if rows <= sub:
        return rows                              # equals full array extent: always legal
    lane_padded = _round_up(lane, 128)           # minor dim is padded to 128 lanes in VMEM
    max_rows = max(sub, budget_bytes // (lane_padded * itemsize))
    tr = min(rows, max_rows)
    tr -= tr % sub                               # dtype-packed sublane multiple
    tr = max(tr, sub)
    # Keep the row-tile grid axis >= 2 wide when possible so both v7x TensorCores
    # get work on this HBM-bound add (one extra ~0.35us grid step elsewhere).
    if tr >= rows and rows >= 2 * sub:
        tr = _round_up((rows + 1) // 2, sub)
    return tr


def _pe_add_pallas(x3: jnp.ndarray, pe3: jnp.ndarray, tile_rows: int) -> jnp.ndarray:
    """x3: (B, R, L); pe3: (1, RC, L) with RC >= R. Returns x3 + pe3[:, :R, :]."""
    B, R, L = x3.shape
    itemsize = jnp.dtype(x3.dtype).itemsize
    row_tiles = -(-R // tile_rows)

    if row_tiles == 1 and B > 1:
        # Single row tile: make batch the outer (sharded) axis so both v7x cores
        # get work. pe block index is constant, so it is still DMA'd only once.
        grid = (B, row_tiles)
        x_map = lambda b, r: (b, r, 0)
        pe_map = lambda b, r: (0, r, 0)
    else:
        # Batch innermost: each pe tile is DMA'd once per row tile and reused
        # across the whole batch (Pallas skips repeated-block DMAs).
        grid = (row_tiles, B)
        x_map = lambda r, b: (b, r, 0)
        pe_map = lambda r, b: (0, r, 0)

    cost = pl.CostEstimate(
        flops=B * R * L,
        transcendentals=0,
        bytes_accessed=(2 * B + 1) * R * L * itemsize,   # pe is read once, not per batch
    )
    return pl.pallas_call(
        _add_pe_kernel,
        out_shape=jax.ShapeDtypeStruct((B, R, L), x3.dtype),
        grid_spec=pltpu.PrefetchScalarGridSpec(
            num_scalar_prefetch=0,
            grid=grid,
            in_specs=[
                pl.BlockSpec((1, tile_rows, L), x_map),       # x tile (double-buffered)
                _pe_block_spec((1, tile_rows, L), pe_map),    # pe tile (single buffer)
            ],
            out_specs=pl.BlockSpec((1, tile_rows, L), x_map),
        ),
        compiler_params=pltpu.CompilerParams(
            dimension_semantics=("parallel", "parallel"),
            vmem_limit_bytes=_VMEM_LIMIT_BYTES,
        ),
        cost_estimate=cost,
    )(x3, pe3)


def positional_encoding_forward(x: jnp.ndarray, pe: jnp.ndarray) -> jnp.ndarray:
    """x: (B, S, D); pe: (1, C, D), C >= S. Returns x + pe[:, :S, :]."""
    B, S, D = x.shape
    C = pe.shape[1]
    assert C >= S, "sequence length exceeds context_size of the PE table"
    if pe.dtype != x.dtype:
        # Build pe in the model dtype (see _build_pe) so this per-call full-table
        # cast (a pure HBM read+write of the whole table) never actually runs.
        pe = pe.astype(x.dtype)

    # Tiny shapes: launch + pipeline prologue/epilogue dwarf the add; XLA fuses it.
    if x.size < _MIN_PALLAS_ELEMS:
        return x + pe[:, :S, :]

    itemsize = jnp.dtype(x.dtype).itemsize

    if (S * D) % 128 == 0:
        # Lane-dense path: flatten (S, D) into rows of 128 lanes (add is layout-agnostic).
        R = (S * D) // 128
        x3 = x.reshape(B, R, 128)
        tile_rows = _pick_tile_rows(R, 128, itemsize)
        if (C * D) % 128 == 0 and tile_rows % 8 == 0:
            # Pass the full table: only the first row-tile blocks are ever DMA'd,
            # so there is no host-side pe[:, :S, :] HBM->HBM copy.
            pe3 = pe.reshape(1, (C * D) // 128, 128)
        else:
            pe3 = pe[:, :S, :].reshape(1, R, 128)
        return _pe_add_pallas(x3, pe3, tile_rows).reshape(B, S, D)

    lane_util = D / _round_up(D, 128)
    if lane_util < 0.5:
        # Narrow D and S*D not a 128-multiple: zero-pad the flattened plane up to a
        # 128-multiple and use the lane-dense kernel. Two cheap XLA pad/slice copies
        # beat 128/D-masked vst.msk stores and the ~128/D VMEM inflation.
        N = S * D
        n_pad = _round_up(N, 128)
        R = n_pad // 128
        x3 = jnp.pad(x.reshape(B, N), ((0, 0), (0, n_pad - N))).reshape(B, R, 128)
        pe3 = jnp.pad(pe[:, :S, :].reshape(1, N), ((0, 0), (0, n_pad - N))).reshape(1, R, 128)
        tile_rows = _pick_tile_rows(R, 128, itemsize)
        out = _pe_add_pallas(x3, pe3, tile_rows)
        return out.reshape(B, n_pad)[:, :N].reshape(B, S, D)

    # General path (D >= ~half a vreg row): tile S, keep D as the full-extent minor
    # axis. VMEM budget already accounts for the lane padding of D.
    tile_rows = _pick_tile_rows(S, D, itemsize)
    pe_in = pe if tile_rows % 8 == 0 else pe[:, :S, :]
    return _pe_add_pallas(x, pe_in, tile_rows)


if __name__ == "__main__":
    key = jax.random.PRNGKey(0)
    k1, k2, k3, k4 = jax.random.split(key, 4)

    # Case 1: tiny module-like shape (batch=2, seq=8, d_model=32) -> fused XLA fallback.
    pe_a = _build_pe(16, 32)
    x_a = jax.random.normal(k1, (2, 8, 32), dtype=jnp.float32)
    out_a = jax.block_until_ready(positional_encoding_forward(x_a, pe_a))
    ref_a = x_a + pe_a[:, :8, :]
    assert out_a.shape == ref_a.shape and jnp.allclose(out_a, ref_a, atol=1e-6)

    # Case 2: lane-dense Pallas path (S*D % 128 == 0): context=2048, d_model=128.
    pe_b = _build_pe(2048, 128)
    x_b = jax.random.normal(k2, (2, 1024, 128), dtype=jnp.float32)
    out_b = jax.block_until_ready(positional_encoding_forward(x_b, pe_b))
    ref_b = x_b + pe_b[:, :1024, :]
    assert out_b.shape == ref_b.shape and jnp.allclose(out_b, ref_b, atol=1e-6)

    # Case 3: narrow-D padded lane-dense path (d_model=24, S*D % 128 != 0).
    pe_c = _build_pe(1024, 24)
    x_c = jax.random.normal(k3, (16, 1000, 24), dtype=jnp.float32)
    out_c = jax.block_until_ready(positional_encoding_forward(x_c, pe_c))
    ref_c = x_c + pe_c[:, :1000, :]
    assert out_c.shape == ref_c.shape and jnp.allclose(out_c, ref_c, atol=1e-6)

    # Case 4: general 3-D tiled path (d_model=192 not a 128-multiple, lane util >= 0.5).
    pe_d = _build_pe(256, 192)
    x_d = jax.random.normal(k4, (16, 101, 192), dtype=jnp.float32)
    out_d = jax.block_until_ready(positional_encoding_forward(x_d, pe_d))
    ref_d = x_d + pe_d[:, :101, :]
    assert out_d.shape == ref_d.shape and jnp.allclose(out_d, ref_d, atol=1e-6)

    print("KERNEL_OK")
</pallas_src>

<mosaic_0001>
module attributes {stable_mosaic.version = 11 : i64} {
  func.func @_add_pe_kernel(%arg0: i32, %arg1: i32, %arg2: memref<1x512x128xf32, #tpu.memory_space<vmem>>, %arg3: memref<1x512x128xf32, #tpu.memory_space<vmem>>, %arg4: memref<1x512x128xf32, #tpu.memory_space<vmem>>) attributes {dimension_semantics = [#tpu.dimension_semantics<parallel>, #tpu.dimension_semantics<parallel>], iteration_bounds = array<i64: 2, 2>, scalar_prefetch = 0 : i64, scratch_operands = 0 : i64, tpu.core_type = #tpu.core_type<tc>, window_params = [{transform_indices = @transform_0, window_bounds = array<i64: 1, 512, 128>}, {pipeline_mode = #tpu.pipeline_mode<synchronous>, transform_indices = @transform_1, window_bounds = array<i64: 1, 512, 128>}, {transform_indices = @transform_2, window_bounds = array<i64: 1, 512, 128>}]} {
    %c0 = arith.constant 0 : index
    %c0_0 = arith.constant 0 : index
    %c0_1 = arith.constant 0 : index
    %0 = vector.load %arg2[%c0, %c0_0, %c0_1] : memref<1x512x128xf32, #tpu.memory_space<vmem>>, vector<1x512x128xf32>
    %c0_2 = arith.constant 0 : index
    %c0_3 = arith.constant 0 : index
    %c0_4 = arith.constant 0 : index
    %1 = vector.load %arg3[%c0_2, %c0_3, %c0_4] : memref<1x512x128xf32, #tpu.memory_space<vmem>>, vector<1x512x128xf32>
    %2 = arith.addf %0, %1 : vector<1x512x128xf32>
    %c0_5 = arith.constant 0 : index
    %c0_6 = arith.constant 0 : index
    %c0_7 = arith.constant 0 : index
    %3 = vector.load %arg4[%c0_5, %c0_6, %c0_7] : memref<1x512x128xf32, #tpu.memory_space<vmem>>, vector<1x512x128xf32>
    tpu.vector_store %arg4[%c0_5, %c0_6, %c0_7], %2 {strides = array<i32>} : memref<1x512x128xf32, #tpu.memory_space<vmem>>, vector<1x512x128xf32>,
    return
  }
  func.func @transform_0(%arg0: i32, %arg1: i32) -> (i32, i32, i32) {
    %c0_i32 = arith.constant 0 : i32
    %c0_i32_0 = arith.constant 0 : i32
    return %arg1, %arg0, %c0_i32 : i32, i32, i32
  }
  func.func @transform_1(%arg0: i32, %arg1: i32) -> (i32, i32, i32) {
    %c0_i32 = arith.constant 0 : i32
    %c0_i32_0 = arith.constant 0 : i32
    %c0_i32_1 = arith.constant 0 : i32
    return %c0_i32, %arg0, %c0_i32_0 : i32, i32, i32
  }
  func.func @transform_2(%arg0: i32, %arg1: i32) -> (i32, i32, i32) {
    %c0_i32 = arith.constant 0 : i32
    %c0_i32_0 = arith.constant 0 : i32
    return %arg1, %arg0, %c0_i32 : i32, i32, i32
  }
}

</mosaic_0001>

<llo_original>
// kernel: tpu_custom_call.1
$region0: #{tpu_custom_call.1}
  #allocation0 [shape = 'u32[]', space=smem, size = 0x4, offset = 0x4, fixed_abs, tag = 'smem constant byte address 0x4 - core index']
  #allocation1 [shape = 'u32[144,128]{1,0:T(1,128)}', space=vmem, size = 0x12000, scoped, tag = 'internal scratch']
  %s0 = inlined_call_operand.hbm [shape: f32[2,1024,128], index: 0, kind: input, shape index: {}]
  %s1 = inlined_call_operand.hbm [shape: f32[1,2048,128], index: 1, kind: input, shape index: {}]
  %s2 = inlined_call_operand.hbm [shape: f32[2,1024,128], index: 2, kind: output, shape index: {}]
  %s3 = sld [smem:[#allocation0]]
  $region49: #{tpu_custom_call.1} parent=0
    _
  %s5 = ssub.s32 1, %s3
  %s6 = scalar_select 0, %s5, %s3
  $region1: #{tpu_custom_call.1} parent=0
    #allocation2 [shape = 'u8[524288]{0}', space=vmem, size = 0x80000, scoped, tag = 'input window, operand 0']
    #allocation3 [shape = 's32[2]{0}', space=sflag, size = 0x8, scoped, tag = 'scoped memory for tpu_custom_call.1']
    #allocation4 [shape = 's32[2]{0}', space=sflag, size = 0x8, scoped, tag = 'scoped memory for tpu_custom_call.1']
    #allocation5 [shape = 'u8[262144]{0}', space=vmem, size = 0x40000, scoped, tag = 'input window, operand 1, single buffered']
    #allocation6 [shape = 's32[1]{0}', space=sflag, size = 0x4, scoped, tag = 'scoped memory for tpu_custom_call.1']
    #allocation7 [shape = 'u8[524288]{0}', space=vmem, size = 0x80000, scoped, tag = 'output window, operand 0']
    %7 = vsyncpa [#allocation3], 0
    %s8 = scalar_lea.sflag [#allocation3], 1
    %9 = vsyncpa %s8, 0
    %10 = vsyncpa [#allocation6], 0
    %11 = vsyncpa [#allocation4], 0
    %s12 = scalar_lea.sflag [#allocation4], 1
    %13 = vsyncpa %s12, 0
    loop: start=0, step=1, limit=6
    $region2: #{tpu_custom_call.1} parent=1 // loop_pre_header
      _
    $region3: #{tpu_custom_call.1} parent=1 // loop_header
      %s15 = sphi 0, %s19
      %p16 = scmp.ge.s32.totalorder %s15, 6
      %s22 = sphi 0, %s34
      %s23 = sphi 0, %s30
      %s24 = sphi 0, %s22
      %s25 = sphi 0, %s23
      %s26 = sphi 0, %s24
      %s27 = sphi 0, %s25
      %s39 = sphi 0, %s41
      %s42 = sphi 0, %s39
      %s43 = sphi 0, %s42
      %s59 = sphi 0, %s43
      %s65 = sphi 0, %s67
      %s68 = sphi 0, %s65
      %s69 = sphi 0, %s68
      %s85 = sphi 0, %s69
      %s93 = sphi 0, %s95
      %s96 = sphi 0, %s93
      %s97 = sphi 0, %s96
      %s113 = sphi 0, %s97
    $region4: #{tpu_custom_call.1} parent=1 // loop_header_branch
      %18 = sbr.rel (%p16) target = $region8
    $region5: #{tpu_custom_call.1} parent=1 // loop_body
      %s20 = ssub.s32 %s15, 1
      %s21 = ssub.s32 %s15, 2
      %s28 = sadd.s32 1, %s23
      %p29 = scmp.ge.s32.totalorder %s28, 2
      %s30 = scalar_select %p29, 0, %s28
      %s31 = sadd.s32 1, %s22
      %s32 = scalar_select %p29, %s31, %s22
      %p33 = scmp.ge.s32.totalorder %s32, 2
      %s34 = scalar_select %p33, 0, %s32
      %s35 = ssub.s32 %s23, %s30
      %s36 = ssub.s32 %s22, %s34
      %s37 = sor.u32 %s35, %s36
      %p38 = scmp.eq.s32.totalorder %s37, 0
      %s40 = sadd.s32 %s39, 1
      %s41 = scalar_select %p38, %s39, %s40
      %p44 = pneg %p38
      %p45 = scmp.eq.s32.totalorder %s15, 3
      %p46 = por %p44, %p45
      %p47 = scmp.ne.s32.totalorder %s39, %s42
      %p48 = scmp.eq.s32.totalorder %s15, 0
      %p49 = por %p47, %p48
      %p50 = scmp.ne.s32.totalorder %s39, %s42
      %p51 = scmp.eq.s32.totalorder %s20, 3
      %p52 = por %p50, %p51
      %p53 = scmp.ne.s32.totalorder %s42, %s43
      %p54 = scmp.eq.s32.totalorder %s20, 0
      %p55 = por %p53, %p54
      %p56 = scmp.ne.s32.totalorder %s42, %s43
      %p57 = scmp.eq.s32.totalorder %s21, 3
      %p58 = por %p56, %p57
      %p60 = scmp.ne.s32.totalorder %s43, %s59
      %p61 = scmp.eq.s32.totalorder %s21, 0
      %p62 = por %p60, %p61
      %s63 = ssub.s32 %s22, %s34
      %p64 = scmp.eq.s32.totalorder %s63, 0
      %s66 = sadd.s32 %s65, 1
      %s67 = scalar_select %p64, %s65, %s66
      %p70 = pneg %p64
      %p71 = scmp.eq.s32.totalorder %s15, 3
      %p72 = por %p70, %p71
      %p73 = scmp.ne.s32.totalorder %s65, %s68
      %p74 = scmp.eq.s32.totalorder %s15, 0
      %p75 = por %p73, %p74
      %p76 = scmp.ne.s32.totalorder %s65, %s68
      %p77 = scmp.eq.s32.totalorder %s20, 3
      %p78 = por %p76, %p77
      %p79 = scmp.ne.s32.totalorder %s68, %s69
      %p80 = scmp.eq.s32.totalorder %s20, 0
      %p81 = por %p79, %p80
      %p82 = scmp.ne.s32.totalorder %s68, %s69
      %p83 = scmp.eq.s32.totalorder %s21, 3
      %p84 = por %p82, %p83
      %p86 = scmp.ne.s32.totalorder %s69, %s85
      %p87 = scmp.eq.s32.totalorder %s21, 0
      %p88 = por %p86, %p87
      %s89 = ssub.s32 %s23, %s30
      %s90 = ssub.s32 %s22, %s34
      %s91 = sor.u32 %s89, %s90
      %p92 = scmp.eq.s32.totalorder %s91, 0
      %s94 = sadd.s32 %s93, 1
      %s95 = scalar_select %p92, %s93, %s94
      %p98 = pneg %p92
      %p99 = scmp.eq.s32.totalorder %s15, 3
      %p100 = por %p98, %p99
      %p101 = scmp.ne.s32.totalorder %s93, %s96
      %p102 = scmp.eq.s32.totalorder %s15, 0
      %p103 = por %p101, %p102
      %p104 = scmp.ne.s32.totalorder %s93, %s96
      %p105 = scmp.eq.s32.totalorder %s20, 3
      %p106 = por %p104, %p105
      %p107 = scmp.ne.s32.totalorder %s96, %s97
      %p108 = scmp.eq.s32.totalorder %s20, 0
      %p109 = por %p107, %p108
      %p110 = scmp.ne.s32.totalorder %s96, %s97
      %p111 = scmp.eq.s32.totalorder %s21, 3
      %p112 = por %p110, %p111
      %p114 = scmp.ne.s32.totalorder %s97, %s113
      %p115 = scmp.eq.s32.totalorder %s21, 0
      %p116 = por %p114, %p115
      %p117 = scmp.le.s32.totalorder 1, %s15
      %p118 = scmp.lt.s32.totalorder %s15, 5
      %p119 = pnand %p117, %p118
      %p120 = pneg %p119
      // Predicated region
      $region9: #{tpu_custom_call.1} parent=5 // pred_check
        _
      $region10: #{tpu_custom_call.1} parent=5 // pred_check_branch
        %122 = sbr.rel (%p119) target = $region12
      $region11: #{tpu_custom_call.1} parent=5 // pred_region
        %s123 = ssub.s32 %s15, 1
        // Predicated region
        $region13: #{tpu_custom_call.1} parent=11 // pred_check
          %p124 = pneg %p81
        $region14: #{tpu_custom_call.1} parent=11 // pred_check_branch
          %126 = sbr.rel (%p124) target = $region16
        $region15: #{tpu_custom_call.1} parent=11 // pred_region
          %s127 = smul.u32 64, %s24
          %s129 = ssub.s32 8192, 8192
          %130 = vsyncadd [#allocation6], %s129
          %s131 = smul.addr %s127, 128
          %s132 = scalar_lea.hbm %s1, %s131
          %s133 = sshll.u32 [#allocation5], 4
          %s134 = int_to_ptr.vmem [resolvable:$true] %s133
          %139 = dma.hbm_to_vmem [thread:$0]  %s132, 8192, %s134, [#allocation6], 128, 128, 8
        $region16: #{tpu_custom_call.1} parent=11 // pred_fallthru
          _
      $region12: #{tpu_custom_call.1} parent=5 // pred_fallthru
        _
      %p140 = scmp.lt.s32.totalorder %s15, 4
      // Predicated region
      $region17: #{tpu_custom_call.1} parent=5 // pred_check
        %p141 = pneg %p140
      $region18: #{tpu_custom_call.1} parent=5 // pred_check_branch
        %143 = sbr.rel (%p141) target = $region20
      $region19: #{tpu_custom_call.1} parent=5 // pred_region
        // Predicated region
        $region21: #{tpu_custom_call.1} parent=19 // pred_check
          %p144 = pneg %p49
        $region22: #{tpu_custom_call.1} parent=19 // pred_check_branch
          %146 = sbr.rel (%p144) target = $region24
        $region23: #{tpu_custom_call.1} parent=19 // pred_region
          %s147 = sand.u32 %s39, 1
          %s148 = scalar_lea.sflag [#allocation3], %s147
          %s149 = sand.u32 %s39, 1
          %s150 = smul.addr %s149, 512
          %s151 = scalar_lea.vmem [#allocation2], %s150
          %s152 = smul.u32 64, %s22
          %s154 = ssub.s32 8192, 8192
          %155 = vsyncadd %s148, %s154
          %s156 = smul.addr %s23, 128
          %s157 = sadd.s32 %s152, %s156
          %s158 = smul.addr %s157, 128
          %s159 = scalar_lea.hbm %s0, %s158
          %s160 = sshll.u32 %s151, 4
          %s161 = int_to_ptr.vmem [resolvable:$true] %s160
          %166 = dma.hbm_to_vmem [thread:$0]  %s159, 8192, %s161, %s148, 128, 128, 8
        $region24: #{tpu_custom_call.1} parent=19 // pred_fallthru
          _
      $region20: #{tpu_custom_call.1} parent=5 // pred_fallthru
        _
      %p167 = scmp.le.s32.totalorder 1, %s15
      %p168 = scmp.lt.s32.totalorder %s15, 5
      %p169 = pnand %p167, %p168
      %p170 = pneg %p169
      // Predicated region
      $region25: #{tpu_custom_call.1} parent=5 // pred_check
        _
      $region26: #{tpu_custom_call.1} parent=5 // pred_check_branch
        %172 = sbr.rel (%p169) target = $region28
      $region27: #{tpu_custom_call.1} parent=5 // pred_region
        %s173 = ssub.s32 %s15, 1
        %s174 = sand.u32 %s42, 1
        %s175 = scalar_lea.sflag [#allocation3], %s174
        %s176 = sand.u32 %s42, 1
        %s177 = smul.addr %s176, 512
        %s178 = scalar_lea.vmem [#allocation2], %s177
        // Predicated region
        $region29: #{tpu_custom_call.1} parent=27 // pred_check
          %p179 = pneg %p55
        $region30: #{tpu_custom_call.1} parent=27 // pred_check_branch
          %181 = sbr.rel (%p179) target = $region32
        $region31: #{tpu_custom_call.1} parent=27 // pred_region
          %182 = dma.done %s175, 8192
        $region32: #{tpu_custom_call.1} parent=27 // pred_fallthru
          _
        // Predicated region
        $region33: #{tpu_custom_call.1} parent=27 // pred_check
          %p183 = pneg %p81
        $region34: #{tpu_custom_call.1} parent=27 // pred_check_branch
          %185 = sbr.rel (%p183) target = $region36
        $region35: #{tpu_custom_call.1} parent=27 // pred_region
          %186 = dma.done [#allocation6], 8192
        $region36: #{tpu_custom_call.1} parent=27 // pred_fallthru
          _
        %s187 = sand.u32 %s42, 1
        %s188 = scalar_lea.sflag [#allocation3], %s187
        %s189 = sand.u32 %s42, 1
        %s190 = smul.addr %s189, 512
        %s191 = scalar_lea.vmem [#allocation2], %s190
        %p192 = pneg %p55
        %p193 = pneg %p52
        %p194 = pneg %p81
        %p195 = pneg %p78
        %p196 = pneg %p109
        %p197 = pneg %p106
        %s198 = sand.u32 %s96, 1
        %s199 = scalar_lea.sflag [#allocation4], %s198
        %s200 = sand.u32 %s96, 1
        %s201 = smul.addr %s200, 512
        %s202 = scalar_lea.vmem [#allocation7], %s201
        %s203 = smul.u32 64, %s24
        %s204 = smul.u32 64, %s24
        %s205 = smul.u32 64, %s24
        %v206 = vld [vmem:[%s178] sm:$0xff]
        %v207 = vld [vmem:[%s178 + $0x8] sm:$0xff]
        %v208 = vld [vmem:[%s178 + $0x10] sm:$0xff]
        %v209 = vld [vmem:[%s178 + $0x18] sm:$0xff]
        %v210 = vld [vmem:[%s178 + $0x20] sm:$0xff]
        %v211 = vld [vmem:[%s178 + $0x28] sm:$0xff]
        %v212 = vld [vmem:[%s178 + $0x30] sm:$0xff]
        %v213 = vld [vmem:[%s178 + $0x38] sm:$0xff]
        %v214 = vld [vmem:[%s178 + $0x40] sm:$0xff]
        %v215 = vld [vmem:[%s178 + $0x48] sm:$0xff]
        %v216 = vld [vmem:[%s178 + $0x50] sm:$0xff]
        %v217 = vld [vmem:[%s178 + $0x58] sm:$0xff]
        %v218 = vld [vmem:[%s178 + $0x60] sm:$0xff]
        %v219 = vld [vmem:[%s178 + $0x68] sm:$0xff]
        %v220 = vld [vmem:[%s178 + $0x70] sm:$0xff]
        %v221 = vld [vmem:[%s178 + $0x78] sm:$0xff]
        %v222 = vld [vmem:[%s178 + $0x80] sm:$0xff]
        %v223 = vld [vmem:[%s178 + $0x88] sm:$0xff]
        %v224 = vld [vmem:[%s178 + $0x90] sm:$0xff]
        %v225 = vld [vmem:[%s178 + $0x98] sm:$0xff]
        %v226 = vld [vmem:[%s178 + $0xa0] sm:$0xff]
        %v227 = vld [vmem:[%s178 + $0xa8] sm:$0xff]
        %v228 = vld [vmem:[%s178 + $0xb0] sm:$0xff]
        %v229 = vld [vmem:[%s178 + $0xb8] sm:$0xff]
        %v230 = vld [vmem:[%s178 + $0xc0] sm:$0xff]
        %v231 = vld [vmem:[%s178 + $0xc8] sm:$0xff]
        %v232 = vld [vmem:[%s178 + $0xd0] sm:$0xff]
        %v233 = vld [vmem:[%s178 + $0xd8] sm:$0xff]
        %v234 = vld [vmem:[%s178 + $0xe0] sm:$0xff]
        %v235 = vld [vmem:[%s178 + $0xe8] sm:$0xff]
        %v236 = vld [vmem:[%s178 + $0xf0] sm:$0xff]
        %v237 = vld [vmem:[%s178 + $0xf8] sm:$0xff]
        %v238 = vld [vmem:[%s178 + $0x100] sm:$0xff]
        %v239 = vld [vmem:[%s178 + $0x108] sm:$0xff]
        %v240 = vld [vmem:[%s178 + $0x110] sm:$0xff]
        %v241 = vld [vmem:[%s178 + $0x118] sm:$0xff]
        %v242 = vld [vmem:[%s178 + $0x120] sm:$0xff]
        %v243 = vld [vmem:[%s178 + $0x128] sm:$0xff]
        %v244 = vld [vmem:[%s178 + $0x130] sm:$0xff]
        %v245 = vld [vmem:[%s178 + $0x138] sm:$0xff]
        %v246 = vld [vmem:[%s178 + $0x140] sm:$0xff]
        %v247 = vld [vmem:[%s178 + $0x148] sm:$0xff]
        %v248 = vld [vmem:[%s178 + $0x150] sm:$0xff]
        %v249 = vld [vmem:[%s178 + $0x158] sm:$0xff]
        %v250 = vld [vmem:[%s178 + $0x160] sm:$0xff]
        %v251 = vld [vmem:[%s178 + $0x168] sm:$0xff]
        %v252 = vld [vmem:[%s178 + $0x170] sm:$0xff]
        %v253 = vld [vmem:[%s178 + $0x178] sm:$0xff]
        %v254 = vld [vmem:[%s178 + $0x180] sm:$0xff]
        %v255 = vld [vmem:[%s178 + $0x188] sm:$0xff]
        %v256 = vld [vmem:[%s178 + $0x190] sm:$0xff]
        %v257 = vld [vmem:[%s178 + $0x198] sm:$0xff]
        %v258 = vld [vmem:[%s178 + $0x1a0] sm:$0xff]
        %v259 = vld [vmem:[%s178 + $0x1a8] sm:$0xff]
        %v260 = vld [vmem:[%s178 + $0x1b0] sm:$0xff]
        %v261 = vld [vmem:[%s178 + $0x1b8] sm:$0xff]
        %v262 = vld [vmem:[%s178 + $0x1c0] sm:$0xff]
        %v263 = vld [vmem:[%s178 + $0x1c8] sm:$0xff]
        %v264 = vld [vmem:[%s178 + $0x1d0] sm:$0xff]
        %v265 = vld [vmem:[%s178 + $0x1d8] sm:$0xff]
        %v266 = vld [vmem:[%s178 + $0x1e0] sm:$0xff]
        %v267 = vld [vmem:[%s178 + $0x1e8] sm:$0xff]
        %v268 = vld [vmem:[%s178 + $0x1f0] sm:$0xff]
        %v269 = vld [vmem:[%s178 + $0x1f8] sm:$0xff]
        %v270 = vld [vmem:[#allocation5] sm:$0xff]
        %v271 = vld [vmem:[#allocation5 + $0x8] sm:$0xff]
        %v272 = vld [vmem:[#allocation5 + $0x10] sm:$0xff]
        %v273 = vld [vmem:[#allocation5 + $0x18] sm:$0xff]
        %v274 = vld [vmem:[#allocation5 + $0x20] sm:$0xff]
        %v275 = vld [vmem:[#allocation5 + $0x28] sm:$0xff]
        %v276 = vld [vmem:[#allocation5 + $0x30] sm:$0xff]
        %v277 = vld [vmem:[#allocation5 + $0x38] sm:$0xff]
        %v278 = vld [vmem:[#allocation5 + $0x40] sm:$0xff]
        %v279 = vld [vmem:[#allocation5 + $0x48] sm:$0xff]
        %v280 = vld [vmem:[#allocation5 + $0x50] sm:$0xff]
        %v281 = vld [vmem:[#allocation5 + $0x58] sm:$0xff]
        %v282 = vld [vmem:[#allocation5 + $0x60] sm:$0xff]
        %v283 = vld [vmem:[#allocation5 + $0x68] sm:$0xff]
        %v284 = vld [vmem:[#allocation5 + $0x70] sm:$0xff]
        %v285 = vld [vmem:[#allocation5 + $0x78] sm:$0xff]
        %v286 = vld [vmem:[#allocation5 + $0x80] sm:$0xff]
        %v287 = vld [vmem:[#allocation5 + $0x88] sm:$0xff]
        %v288 = vld [vmem:[#allocation5 + $0x90] sm:$0xff]
        %v289 = vld [vmem:[#allocation5 + $0x98] sm:$0xff]
        %v290 = vld [vmem:[#allocation5 + $0xa0] sm:$0xff]
        %v291 = vld [vmem:[#allocation5 + $0xa8] sm:$0xff]
        %v292 = vld [vmem:[#allocation5 + $0xb0] sm:$0xff]
        %v293 = vld [vmem:[#allocation5 + $0xb8] sm:$0xff]
        %v294 = vld [vmem:[#allocation5 + $0xc0] sm:$0xff]
        %v295 = vld [vmem:[#allocation5 + $0xc8] sm:$0xff]
        %v296 = vld [vmem:[#allocation5 + $0xd0] sm:$0xff]
        %v297 = vld [vmem:[#allocation5 + $0xd8] sm:$0xff]
        %v298 = vld [vmem:[#allocation5 + $0xe0] sm:$0xff]
        %v299 = vld [vmem:[#allocation5 + $0xe8] sm:$0xff]
        %v300 = vld [vmem:[#allocation5 + $0xf0] sm:$0xff]
        %v301 = vld [vmem:[#allocation5 + $0xf8] sm:$0xff]
        %v302 = vld [vmem:[#allocation5 + $0x100] sm:$0xff]
        %v303 = vld [vmem:[#allocation5 + $0x108] sm:$0xff]
        %v304 = vld [vmem:[#allocation5 + $0x110] sm:$0xff]
        %v305 = vld [vmem:[#allocation5 + $0x118] sm:$0xff]
        %v306 = vld [vmem:[#allocation5 + $0x120] sm:$0xff]
        %v307 = vld [vmem:[#allocation5 + $0x128] sm:$0xff]
        %v308 = vld [vmem:[#allocation5 + $0x130] sm:$0xff]
        %v309 = vld [vmem:[#allocation5 + $0x138] sm:$0xff]
        %v310 = vld [vmem:[#allocation5 + $0x140] sm:$0xff]
        %v311 = vld [vmem:[#allocation5 + $0x148] sm:$0xff]
        %v312 = vld [vmem:[#allocation5 + $0x150] sm:$0xff]
        %v313 = vld [vmem:[#allocation5 + $0x158] sm:$0xff]
        %v314 = vld [vmem:[#allocation5 + $0x160] sm:$0xff]
        %v315 = vld [vmem:[#allocation5 + $0x168] sm:$0xff]
        %v316 = vld [vmem:[#allocation5 + $0x170] sm:$0xff]
        %v317 = vld [vmem:[#allocation5 + $0x178] sm:$0xff]
        %v318 = vld [vmem:[#allocation5 + $0x180] sm:$0xff]
        %v319 = vld [vmem:[#allocation5 + $0x188] sm:$0xff]
        %v320 = vld [vmem:[#allocation5 + $0x190] sm:$0xff]
        %v321 = vld [vmem:[#allocation5 + $0x198] sm:$0xff]
        %v322 = vld [vmem:[#allocation5 + $0x1a0] sm:$0xff]
        %v323 = vld [vmem:[#allocation5 + $0x1a8] sm:$0xff]
        %v324 = vld [vmem:[#allocation5 + $0x1b0] sm:$0xff]
        %v325 = vld [vmem:[#allocation5 + $0x1b8] sm:$0xff]
        %v326 = vld [vmem:[#allocation5 + $0x1c0] sm:$0xff]
        %v327 = vld [vmem:[#allocation5 + $0x1c8] sm:$0xff]
        %v328 = vld [vmem:[#allocation5 + $0x1d0] sm:$0xff]
        %v329 = vld [vmem:[#allocation5 + $0x1d8] sm:$0xff]
        %v330 = vld [vmem:[#allocation5 + $0x1e0] sm:$0xff]
        %v331 = vld [vmem:[#allocation5 + $0x1e8] sm:$0xff]
        %v332 = vld [vmem:[#allocation5 + $0x1f0] sm:$0xff]
        %v333 = vld [vmem:[#allocation5 + $0x1f8] sm:$0xff]
        %v334 = vadd.f32 %v206, %v270
        %v335 = vadd.f32 %v207, %v271
        %v336 = vadd.f32 %v208, %v272
        %v337 = vadd.f32 %v209, %v273
        %v338 = vadd.f32 %v210, %v274
        %v339 = vadd.f32 %v211, %v275
        %v340 = vadd.f32 %v212, %v276
        %v341 = vadd.f32 %v213, %v277
        %v342 = vadd.f32 %v214, %v278
        %v343 = vadd.f32 %v215, %v279
        %v344 = vadd.f32 %v216, %v280
        %v345 = vadd.f32 %v217, %v281
        %v346 = vadd.f32 %v218, %v282
        %v347 = vadd.f32 %v219, %v283
        %v348 = vadd.f32 %v220, %v284
        %v349 = vadd.f32 %v221, %v285
        %v350 = vadd.f32 %v222, %v286
        %v351 = vadd.f32 %v223, %v287
        %v352 = vadd.f32 %v224, %v288
        %v353 = vadd.f32 %v225, %v289
        %v354 = vadd.f32 %v226, %v290
        %v355 = vadd.f32 %v227, %v291
        %v356 = vadd.f32 %v228, %v292
        %v357 = vadd.f32 %v229, %v293
        %v358 = vadd.f32 %v230, %v294
        %v359 = vadd.f32 %v231, %v295
        %v360 = vadd.f32 %v232, %v296
        %v361 = vadd.f32 %v233, %v297
        %v362 = vadd.f32 %v234, %v298
        %v363 = vadd.f32 %v235, %v299
        %v364 = vadd.f32 %v236, %v300
        %v365 = vadd.f32 %v237, %v301
        %v366 = vadd.f32 %v238, %v302
        %v367 = vadd.f32 %v239, %v303
        %v368 = vadd.f32 %v240, %v304
        %v369 = vadd.f32 %v241, %v305
        %v370 = vadd.f32 %v242, %v306
        %v371 = vadd.f32 %v243, %v307
        %v372 = vadd.f32 %v244, %v308
        %v373 = vadd.f32 %v245, %v309
        %v374 = vadd.f32 %v246, %v310
        %v375 = vadd.f32 %v247, %v311
        %v376 = vadd.f32 %v248, %v312
        %v377 = vadd.f32 %v249, %v313
        %v378 = vadd.f32 %v250, %v314
        %v379 = vadd.f32 %v251, %v315
        %v380 = vadd.f32 %v252, %v316
        %v381 = vadd.f32 %v253, %v317
        %v382 = vadd.f32 %v254, %v318
        %v383 = vadd.f32 %v255, %v319
        %v384 = vadd.f32 %v256, %v320
        %v385 = vadd.f32 %v257, %v321
        %v386 = vadd.f32 %v258, %v322
        %v387 = vadd.f32 %v259, %v323
        %v388 = vadd.f32 %v260, %v324
        %v389 = vadd.f32 %v261, %v325
        %v390 = vadd.f32 %v262, %v326
        %v391 = vadd.f32 %v263, %v327
        %v392 = vadd.f32 %v264, %v328
        %v393 = vadd.f32 %v265, %v329
        %v394 = vadd.f32 %v266, %v330
        %v395 = vadd.f32 %v267, %v331
        %v396 = vadd.f32 %v268, %v332
        %v397 = vadd.f32 %v269, %v333
        %398 = vst [vmem:[%s202] sm:$0xff] %v334
        %399 = vst [vmem:[%s202 + $0x8] sm:$0xff] %v335
        %400 = vst [vmem:[%s202 + $0x10] sm:$0xff] %v336
        %401 = vst [vmem:[%s202 + $0x18] sm:$0xff] %v337
        %402 = vst [vmem:[%s202 + $0x20] sm:$0xff] %v338
        %403 = vst [vmem:[%s202 + $0x28] sm:$0xff] %v339
        %404 = vst [vmem:[%s202 + $0x30] sm:$0xff] %v340
        %405 = vst [vmem:[%s202 + $0x38] sm:$0xff] %v341
        %406 = vst [vmem:[%s202 + $0x40] sm:$0xff] %v342
        %407 = vst [vmem:[%s202 + $0x48] sm:$0xff] %v343
        %408 = vst [vmem:[%s202 + $0x50] sm:$0xff] %v344
        %409 = vst [vmem:[%s202 + $0x58] sm:$0xff] %v345
        %410 = vst [vmem:[%s202 + $0x60] sm:$0xff] %v346
        %411 = vst [vmem:[%s202 + $0x68] sm:$0xff] %v347
        %412 = vst [vmem:[%s202 + $0x70] sm:$0xff] %v348
        %413 = vst [vmem:[%s202 + $0x78] sm:$0xff] %v349
        %414 = vst [vmem:[%s202 + $0x80] sm:$0xff] %v350
        %415 = vst [vmem:[%s202 + $0x88] sm:$0xff] %v351
        %416 = vst [vmem:[%s202 + $0x90] sm:$0xff] %v352
        %417 = vst [vmem:[%s202 + $0x98] sm:$0xff] %v353
        %418 = vst [vmem:[%s202 + $0xa0] sm:$0xff] %v354
        %419 = vst [vmem:[%s202 + $0xa8] sm:$0xff] %v355
        %420 = vst [vmem:[%s202 + $0xb0] sm:$0xff] %v356
        %421 = vst [vmem:[%s202 + $0xb8] sm:$0xff] %v357
        %422 = vst [vmem:[%s202 + $0xc0] sm:$0xff] %v358
        %423 = vst [vmem:[%s202 + $0xc8] sm:$0xff] %v359
        %424 = vst [vmem:[%s202 + $0xd0] sm:$0xff] %v360
        %425 = vst [vmem:[%s202 + $0xd8] sm:$0xff] %v361
        %426 = vst [vmem:[%s202 + $0xe0] sm:$0xff] %v362
        %427 = vst [vmem:[%s202 + $0xe8] sm:$0xff] %v363
        %428 = vst [vmem:[%s202 + $0xf0] sm:$0xff] %v364
        %429 = vst [vmem:[%s202 + $0xf8] sm:$0xff] %v365
        %430 = vst [vmem:[%s202 + $0x100] sm:$0xff] %v366
        %431 = vst [vmem:[%s202 + $0x108] sm:$0xff] %v367
        %432 = vst [vmem:[%s202 + $0x110] sm:$0xff] %v368
        %433 = vst [vmem:[%s202 + $0x118] sm:$0xff] %v369
        %434 = vst [vmem:[%s202 + $0x120] sm:$0xff] %v370
        %435 = vst [vmem:[%s202 + $0x128] sm:$0xff] %v371
        %436 = vst [vmem:[%s202 + $0x130] sm:$0xff] %v372
        %437 = vst [vmem:[%s202 + $0x138] sm:$0xff] %v373
        %438 = vst [vmem:[%s202 + $0x140] sm:$0xff] %v374
        %439 = vst [vmem:[%s202 + $0x148] sm:$0xff] %v375
        %440 = vst [vmem:[%s202 + $0x150] sm:$0xff] %v376
        %441 = vst [vmem:[%s202 + $0x158] sm:$0xff] %v377
        %442 = vst [vmem:[%s202 + $0x160] sm:$0xff] %v378
        %443 = vst [vmem:[%s202 + $0x168] sm:$0xff] %v379
        %444 = vst [vmem:[%s202 + $0x170] sm:$0xff] %v380
        %445 = vst [vmem:[%s202 + $0x178] sm:$0xff] %v381
        %446 = vst [vmem:[%s202 + $0x180] sm:$0xff] %v382
        %447 = vst [vmem:[%s202 + $0x188] sm:$0xff] %v383
        %448 = vst [vmem:[%s202 + $0x190] sm:$0xff] %v384
        %449 = vst [vmem:[%s202 + $0x198] sm:$0xff] %v385
        %450 = vst [vmem:[%s202 + $0x1a0] sm:$0xff] %v386
        %451 = vst [vmem:[%s202 + $0x1a8] sm:$0xff] %v387
        %452 = vst [vmem:[%s202 + $0x1b0] sm:$0xff] %v388
        %453 = vst [vmem:[%s202 + $0x1b8] sm:$0xff] %v389
        %454 = vst [vmem:[%s202 + $0x1c0] sm:$0xff] %v390
        %455 = vst [vmem:[%s202 + $0x1c8] sm:$0xff] %v391
        %456 = vst [vmem:[%s202 + $0x1d0] sm:$0xff] %v392
        %457 = vst [vmem:[%s202 + $0x1d8] sm:$0xff] %v393
        %458 = vst [vmem:[%s202 + $0x1e0] sm:$0xff] %v394
        %459 = vst [vmem:[%s202 + $0x1e8] sm:$0xff] %v395
        %460 = vst [vmem:[%s202 + $0x1f0] sm:$0xff] %v396
        %461 = vst [vmem:[%s202 + $0x1f8] sm:$0xff] %v397
        %s462 = sand.u32 %s96, 1
        %s463 = scalar_lea.sflag [#allocation4], %s462
        %s464 = sand.u32 %s96, 1
        %s465 = smul.addr %s464, 512
        %s466 = scalar_lea.vmem [#allocation7], %s465
        // Predicated region
        $region37: #{tpu_custom_call.1} parent=27 // pred_check
          %p467 = pneg %p106
        $region38: #{tpu_custom_call.1} parent=27 // pred_check_branch
          %469 = sbr.rel (%p467) target = $region40
        $region39: #{tpu_custom_call.1} parent=27 // pred_region
          %s470 = smul.u32 64, %s24
          %s472 = ssub.s32 8192, 8192
          %473 = vsyncadd %s463, %s472
          %s474 = smul.addr %s25, 128
          %s475 = sadd.s32 %s470, %s474
          %s476 = smul.addr %s475, 128
          %s477 = scalar_lea.hbm %s2, %s476
          %s478 = sshll.u32 %s466, 4
          %s479 = int_to_ptr.vmem [resolvable:$true] %s478
          %484 = dma.vmem_to_hbm [thread:$0]  %s479, 8192, %s477, %s463, 128, 128, 8
        $region40: #{tpu_custom_call.1} parent=27 // pred_fallthru
          _
      $region28: #{tpu_custom_call.1} parent=5 // pred_fallthru
        _
      %p485 = scmp.le.s32.totalorder 2, %s15
      // Predicated region
      $region41: #{tpu_custom_call.1} parent=5 // pred_check
        %p486 = pneg %p485
      $region42: #{tpu_custom_call.1} parent=5 // pred_check_branch
        %488 = sbr.rel (%p486) target = $region44
      $region43: #{tpu_custom_call.1} parent=5 // pred_region
        %s489 = ssub.s32 %s15, 2
        // Predicated region
        $region45: #{tpu_custom_call.1} parent=43 // pred_check
          %p490 = pneg %p112
        $region46: #{tpu_custom_call.1} parent=43 // pred_check_branch
          %492 = sbr.rel (%p490) target = $region48
        $region47: #{tpu_custom_call.1} parent=43 // pred_region
          %s493 = sand.u32 %s97, 1
          %s494 = scalar_lea.sflag [#allocation4], %s493
          %s495 = sand.u32 %s97, 1
          %s496 = smul.addr %s495, 512
          %s497 = scalar_lea.vmem [#allocation7], %s496
          %498 = dma.done %s494, 8192
        $region48: #{tpu_custom_call.1} parent=43 // pred_fallthru
          _
      $region44: #{tpu_custom_call.1} parent=5 // pred_fallthru
        _
    $region6: #{tpu_custom_call.1} parent=1 // loop_footer
      %s19 = sadd.s32 1, %s15
    $region7: #{tpu_custom_call.1} parent=1 // loop_footer_branch
      %14 = sbr.rel target = $region3
    $region8: #{tpu_custom_call.1} parent=1 // loop_exit
      _
    %499 = vsyncpa [#allocation3], 1
    %s500 = scalar_lea.sflag [#allocation3], 1
    %501 = vsyncpa %s500, 1
    %502 = vsyncpa [#allocation6], 1
    %503 = vsyncpa [#allocation4], 1
    %s504 = scalar_lea.sflag [#allocation4], 1
    %505 = vsyncpa %s504, 1

</llo_original>
